<compile_context>
chip_gen: v5e
topology: v5e:2x2
jax: 0.10.0
libtpu: 0.0.40
codegen_flags: <defaults>
</compile_context>

<pallas_src>
import functools

import jax
import jax.numpy as jnp
from jax import lax
from jax.experimental import pallas as pl
from jax.experimental.pallas import tpu as pltpu


def _cdiv(a, b):
    return -(-a // b)


def _round_up(x, m):
    return _cdiv(x, m) * m


def _block_bytes_budget():
    """Generation-aware per-step input block budget (~1/32 of physical VMEM:
    4 MiB on v5e/v6e, 2 MiB on v7x).  Two double-buffered input blocks plus
    <=512 KiB of f32 chunk temporaries stay far below every generation's
    scoped VMEM limit."""
    vmem_bytes = 64 * 1024 * 1024          # conservative fallback (v7x-sized)
    try:
        info = pltpu.get_tpu_info()
        v = getattr(info, "vmem_capacity_bytes", None)
        if v:
            vmem_bytes = int(v)
    except Exception:
        pass
    return int(min(4 * 1024 * 1024, max(1 * 1024 * 1024, vmem_bytes // 32)))


def _sumsq_kernel(g_ref, acc_ref, *, block_rows, chunk_rows, n_chunks,
                  valid_rows, mask_tail, b_blk):
    """Grid (b, k).  g_ref: (b_blk, block_rows, 128) native-dtype tile.
    acc_ref: resident (b_blk, 8, 128) f32 accumulator (output block of b)."""
    k = pl.program_id(1)

    @pl.when(k == 0)
    def _():
        acc_ref[...] = jnp.zeros_like(acc_ref)

    def chunk_at(c0):
        g = g_ref[:, pl.ds(c0, chunk_rows), :].astype(jnp.float32)
        if mask_tail:
            # The last feature block (and/or rows rounded up to the chunk
            # size) reads past the array; those sublanes are unspecified, so
            # zero them BEFORE squaring.  cmp+select is VPU filler — the
            # kernel is HBM-bound on every generation.
            row = (k * block_rows + c0
                   + lax.broadcasted_iota(jnp.int32,
                                          (b_blk, chunk_rows, 128), 1))
            g = jnp.where(row < valid_rows, g, 0.0)
        g2 = g * g
        # Fold chunk_rows sublanes into the 8-sublane accumulator: the reshape
        # groups whole (8, 128) f32 tiles, so the reduction is pure vreg-wise
        # VPU adds (no relayout, no per-step cross-lane reduce).
        acc_ref[...] += jnp.sum(
            g2.reshape(b_blk, chunk_rows // 8, 8, 128), axis=1)

    if n_chunks == 1:
        chunk_at(0)
    else:
        def body(i, carry):
            chunk_at(pl.multiple_of(i * chunk_rows, chunk_rows))
            return carry
        lax.fori_loop(0, n_chunks, body, 0, unroll=True)


def descriminator_loss(predg, predt, predh, grad_xhat, lam,
                       *, target_block_bytes=None):
    """Pallas implementation of DescriminatorLoss.forward.

    predg, predt, predh : [B, 1]  (predh only participates via grad_xhat)
    grad_xhat           : gradient of predh w.r.t. xhat, any shape [B, ...]
    lam                 : gradient-penalty weight
    """
    del predh  # only used through its gradient (computed by the caller)
    B = grad_xhat.shape[0]
    g = grad_xhat.reshape(B, -1)                 # native dtype on the wire
    D = g.shape[1]

    itemsize = jnp.dtype(g.dtype).itemsize
    sub = {4: 8, 2: 16, 1: 32}.get(itemsize, 8)  # min sublane mult per dtype

    rows = _cdiv(D, 128)
    padded = rows * 128 != D
    if padded:
        # Lane pad only (<=127 zeros/row) so the (B, rows, 128) view exists;
        # allow_input_fusion below lets XLA fuse pad+reshape into the kernel's
        # input stream (no second full HBM copy of the gradient).
        g = jnp.pad(g, ((0, 0), (0, rows * 128 - D)))
    g3 = g.reshape(B, rows, 128)

    # v7x: the two TensorCores shard the grid only along parallel axes.  With
    # a single batch row, split its feature rows into two pseudo batch rows
    # (free reshape, summed back in the finalize) so the parallel b axis has
    # work for both cores.  Harmless no-op on single-core v5e/v6e.
    split = 1
    if B == 1 and rows % 2 == 0 and rows >= 4 * sub:
        split = 2
        rows = rows // 2
        g3 = g3.reshape(B * split, rows, 128)
    B_eff = B * split

    blk_bytes = (int(target_block_bytes) if target_block_bytes
                 else _block_bytes_budget())
    row_bytes = 128 * itemsize
    rows_sub = _round_up(rows, sub)
    budget_rows = max(sub, (blk_bytes // row_bytes) // sub * sub)
    f32_chunk_elems = 512 * 1024 // 4            # <=512 KiB live f32 temps

    if rows_sub <= budget_rows:
        # Small-feature regime: one feature step; pack several batch rows per
        # grid step so each DMA stays large instead of B tiny ones.
        b_cap_in = max(1, blk_bytes // (rows_sub * row_bytes))
        b_cap_f32 = max(1, f32_chunk_elems // (sub * 128))
        b_blk = max(1, min(B_eff, b_cap_in, b_cap_f32))
        cr = max(sub, min(rows_sub,
                          (f32_chunk_elems // (128 * b_blk)) // sub * sub))
        block_rows = _round_up(rows, cr)
        num_k = 1
    else:
        # Large-feature regime: stream one batch row's features in big blocks.
        b_blk = 1
        cr = max(sub, min(budget_rows,
                          (f32_chunk_elems // 128) // sub * sub))
        block_rows = max(cr, (budget_rows // cr) * cr)
        num_k = _cdiv(rows, block_rows)
    n_chunks = block_rows // cr
    mask_tail = (num_k * block_rows != rows)     # static: ragged feature tail
    grid_b = _cdiv(B_eff, b_blk)

    kernel = functools.partial(
        _sumsq_kernel, block_rows=block_rows, chunk_rows=cr,
        n_chunks=n_chunks, valid_rows=rows, mask_tail=mask_tail, b_blk=b_blk)

    cp = dict(dimension_semantics=("parallel", "arbitrary"),
              vmem_limit_bytes=32 * 1024 * 1024)
    if padded:
        cp["allow_input_fusion"] = [True]

    partial_out = pl.pallas_call(
        kernel,
        out_shape=jax.ShapeDtypeStruct((B_eff, 8, 128), jnp.float32),
        grid_spec=pltpu.PrefetchScalarGridSpec(
            num_scalar_prefetch=0,
            grid=(grid_b, num_k),
            in_specs=[
                pl.BlockSpec((b_blk, block_rows, 128), lambda b, k: (b, k, 0)),
            ],
            out_specs=pl.BlockSpec((b_blk, 8, 128), lambda b, k: (b, 0, 0)),
        ),
        compiler_params=pltpu.CompilerParams(**cp),
        cost_estimate=pl.CostEstimate(
            flops=2 * B_eff * rows * 128,
            transcendentals=0,
            bytes_accessed=(B_eff * rows * 128 * itemsize
                            + B_eff * 8 * 128 * 4)),
    )(g3)

    # O(B) finalize in plain JAX.
    sumsq = jnp.sum(partial_out.reshape(B, split, 8, 128), axis=(1, 2, 3))
    norm = jnp.sqrt(sumsq)                                      # [B]
    pen = lam * (norm - 1.0) ** 2                               # [B]
    pg = predg.astype(jnp.float32)
    pt = predt.astype(jnp.float32)
    # PyTorch: (predg - predt)[B,1] + pen[B] broadcasts to [B,B], then .mean()
    return jnp.mean((pg - pt) + pen)


def _reference(predg, predt, grad, lam):
    B = grad.shape[0]
    gf = grad.reshape(B, -1).astype(jnp.float32)
    pen = lam * (jnp.linalg.norm(gf, axis=1) - 1.0) ** 2
    return jnp.mean((predg.astype(jnp.float32)
                     - predt.astype(jnp.float32)) + pen[None, :])


if __name__ == "__main__":
    key = jax.random.PRNGKey(0)
    lam = 10.0

    # ---- main case: B=2, C=4, H=W=16 (D=1024), f32, jitted ----------------
    B, C, H, W = 2, 4, 16, 16
    k1, k2, k3, k4, k5, k6, k7 = jax.random.split(key, 7)
    xhat = jax.random.normal(k1, (B, C, H, W), jnp.float32)
    predg = jax.random.normal(k2, (B, 1), jnp.float32)
    predt = jax.random.normal(k3, (B, 1), jnp.float32)

    # TODO(synk): torch.autograd.grad(predh, xhat) has no in-kernel
    # equivalent; reproduced here with jax.vjp of a synthetic discriminator.
    w_disc = 0.01 * jax.random.normal(k4, (C * H * W, 1), jnp.float32)

    def discriminator(x):
        return x.reshape(x.shape[0], -1) @ w_disc               # [B, 1]

    predh, vjp_fn = jax.vjp(discriminator, xhat)
    grad_xhat = vjp_fn(jnp.ones((B, 1), jnp.float32))[0]        # [B, C, H, W]

    loss = jax.jit(descriminator_loss)(predg, predt, predh, grad_xhat, lam)
    jax.block_until_ready(loss)
    ref = _reference(predg, predt, grad_xhat, lam)
    assert jnp.allclose(loss, ref, atol=1e-5, rtol=1e-5), (loss, ref)

    # ---- large ragged feature dim: K>1 streaming + in-kernel tail mask ----
    D2 = 100000                                   # not a multiple of 128
    grad2 = 0.01 * jax.random.normal(k5, (B, 1, 1, D2), jnp.float32)
    loss2 = descriminator_loss(predg, predt, predh, grad2, lam,
                               target_block_bytes=64 * 1024)
    ref2 = _reference(predg, predt, grad2, lam)
    assert jnp.allclose(loss2, ref2, atol=1e-3, rtol=1e-4), (loss2, ref2)

    # ---- bf16 gradient, tiny ragged D: native-dtype streaming + mask ------
    Bb = 3
    gradb = jax.random.normal(k6, (Bb, 3, 9, 9), jnp.bfloat16)
    pgb = jax.random.normal(k7, (Bb, 1), jnp.float32)
    ptb = jax.random.normal(k2, (Bb, 1), jnp.float32)
    loss3 = descriminator_loss(pgb, ptb, pgb, gradb, lam)
    ref3 = _reference(pgb, ptb, gradb, lam)
    assert jnp.allclose(loss3, ref3, atol=1e-2, rtol=1e-3), (loss3, ref3)

    # ---- B == 1: pseudo-batch split keeps both v7x TensorCores busy -------
    grad4 = 0.05 * jax.random.normal(k5, (1, 1, 64, 64), jnp.float32)
    pg1 = predg[:1]
    pt1 = predt[:1]
    loss4 = descriminator_loss(pg1, pt1, pg1, grad4, lam)
    ref4 = _reference(pg1, pt1, grad4, lam)
    assert jnp.allclose(loss4, ref4, atol=1e-4, rtol=1e-4), (loss4, ref4)

    print("KERNEL_OK")
</pallas_src>

<mosaic_0001>
module attributes {stable_mosaic.version = 11 : i64} {
  func.func @_sumsq_kernel(%arg0: i32, %arg1: i32, %arg2: memref<2x8x128xf32, #tpu.memory_space<vmem>>, %arg3: memref<2x8x128xf32, #tpu.memory_space<vmem>>) attributes {dimension_semantics = [#tpu.dimension_semantics<parallel>, #tpu.dimension_semantics<arbitrary>], iteration_bounds = array<i64: 1, 1>, scalar_prefetch = 0 : i64, scratch_operands = 0 : i64, tpu.core_type = #tpu.core_type<tc>, window_params = [{transform_indices = @transform_0, window_bounds = array<i64: 2, 8, 128>}, {transform_indices = @transform_1, window_bounds = array<i64: 2, 8, 128>}]} {
    %c0_i32 = arith.constant 0 : i32
    %0 = arith.cmpi eq, %arg1, %c0_i32 : i32
    %1 = arith.extui %0 : i1 to i32
    %c0_i32_0 = arith.constant 0 : i32
    %2 = arith.cmpi ne, %1, %c0_i32_0 : i32
    scf.if %2 {
      %cst_9 = arith.constant 0.000000e+00 : f32
      %10 = vector.broadcast %cst_9 : f32 to vector<2x8x128xf32>
      %c0_10 = arith.constant 0 : index
      %c0_11 = arith.constant 0 : index
      %c0_12 = arith.constant 0 : index
      %11 = vector.load %arg3[%c0_10, %c0_11, %c0_12] : memref<2x8x128xf32, #tpu.memory_space<vmem>>, vector<2x8x128xf32>
      tpu.vector_store %arg3[%c0_10, %c0_11, %c0_12], %10 {strides = array<i32>} : memref<2x8x128xf32, #tpu.memory_space<vmem>>, vector<2x8x128xf32>,
    } else {
    }
    %c0 = arith.constant 0 : index
    %c0_1 = arith.constant 0 : index
    %c0_2 = arith.constant 0 : index
    %3 = vector.load %arg2[%c0, %c0_1, %c0_2] : memref<2x8x128xf32, #tpu.memory_space<vmem>>, vector<2x8x128xf32>
    %4 = arith.mulf %3, %3 : vector<2x8x128xf32>
    %c0_3 = arith.constant 0 : index
    %c0_4 = arith.constant 0 : index
    %c0_5 = arith.constant 0 : index
    %5 = vector.load %arg3[%c0_3, %c0_4, %c0_5] : memref<2x8x128xf32, #tpu.memory_space<vmem>>, vector<2x8x128xf32>
    %6 = vector.shape_cast %4 : vector<2x8x128xf32> to vector<2x1x8x128xf32>
    %cst = arith.constant dense<0.000000e+00> : vector<2x8x128xf32>
    %7 = vector.multi_reduction <add>, %6, %cst [1] : vector<2x1x8x128xf32> to vector<2x8x128xf32>
    %8 = arith.addf %5, %7 : vector<2x8x128xf32>
    %c0_6 = arith.constant 0 : index
    %c0_7 = arith.constant 0 : index
    %c0_8 = arith.constant 0 : index
    %9 = vector.load %arg3[%c0_6, %c0_7, %c0_8] : memref<2x8x128xf32, #tpu.memory_space<vmem>>, vector<2x8x128xf32>
    tpu.vector_store %arg3[%c0_6, %c0_7, %c0_8], %8 {strides = array<i32>} : memref<2x8x128xf32, #tpu.memory_space<vmem>>, vector<2x8x128xf32>,
    return
  }
  func.func @transform_0(%arg0: i32, %arg1: i32) -> (i32, i32, i32) {
    %c0_i32 = arith.constant 0 : i32
    %c0_i32_0 = arith.constant 0 : i32
    return %arg0, %arg1, %c0_i32 : i32, i32, i32
  }
  func.func @transform_1(%arg0: i32, %arg1: i32) -> (i32, i32, i32) {
    %c0_i32 = arith.constant 0 : i32
    %c0_i32_0 = arith.constant 0 : i32
    %c0_i32_1 = arith.constant 0 : i32
    return %arg0, %c0_i32, %c0_i32_0 : i32, i32, i32
  }
}

</mosaic_0001>

<llo_original>
// kernel: descriminator_loss.1
$region0: #{descriminator_loss.1}
  #allocation0 [shape = 'u32[]', space=smem, size = 0x4, offset = 0x4, fixed_abs, tag = 'smem constant byte address 0x4 - core index']
  #allocation1 [shape = 'u32[72,128]{1,0:T(1,128)}', space=vmem, size = 0x9000, scoped, tag = 'internal scratch']
  %s0 = inlined_call_operand.vmem [shape: f32[2,8,128], index: 0, kind: input, shape index: {}]
  %s1 = inlined_call_operand.vmem [shape: f32[2,8,128], index: 1, kind: output, shape index: {}]
  %s2 = sld [smem:[#allocation0]]
  $region18: #{descriminator_loss.1} parent=0
    _
  %s4 = ssub.s32 1, %s2
  %s5 = scalar_select 0, %s4, %s2
  // Predicated region
  $region2: #{descriminator_loss.1} parent=0 // pred_check
    _
  $region3: #{descriminator_loss.1} parent=0 // pred_check_branch
    %7 = sbr.rel (0) target = $region5
  $region4: #{descriminator_loss.1} parent=0 // pred_region
    _
  $region5: #{descriminator_loss.1} parent=0 // pred_fallthru
    _
  %p8 = scmp.eq.s32.totalorder 0, 0
  // Predicated region
  $region6: #{descriminator_loss.1} parent=0 // pred_check
    %p9 = pneg %p8
  $region7: #{descriminator_loss.1} parent=0 // pred_check_branch
    %11 = sbr.rel (%p9) target = $region9
  $region8: #{descriminator_loss.1} parent=0 // pred_region
    %12 = vst [vmem:[%s1] sm:$0xff] 0.0
    %13 = vst [vmem:[%s1 + $0x8] sm:$0xff] 0.0
  $region9: #{descriminator_loss.1} parent=0 // pred_fallthru
    _
  %v14 = vld [vmem:[%s0] sm:$0xff]
  %v15 = vld [vmem:[%s0 + $0x8] sm:$0xff]
  %v16 = vmul.f32 %v14, %v14
  %v17 = vmul.f32 %v15, %v15
  %v18 = vld [vmem:[%s1] sm:$0xff]
  %v19 = vld [vmem:[%s1 + $0x8] sm:$0xff]
  %v20 = vadd.f32 %v16, 0.0
  %v21 = vadd.f32 %v17, 0.0
  %v22 = vadd.f32 %v18, %v20
  %v23 = vadd.f32 %v19, %v21
  %24 = vst [vmem:[%s1] sm:$0xff] %v22
  %25 = vst [vmem:[%s1 + $0x8] sm:$0xff] %v23
  // Predicated region
  $region10: #{descriminator_loss.1} parent=0 // pred_check
    _
  $region11: #{descriminator_loss.1} parent=0 // pred_check_branch
    %27 = sbr.rel (0) target = $region13
  $region12: #{descriminator_loss.1} parent=0 // pred_region
    _
  $region13: #{descriminator_loss.1} parent=0 // pred_fallthru
    _
  // Predicated region
  $region14: #{descriminator_loss.1} parent=0 // pred_check
    _
  $region15: #{descriminator_loss.1} parent=0 // pred_check_branch
    %29 = sbr.rel (0) target = $region17
  $region16: #{descriminator_loss.1} parent=0 // pred_region
    _
  $region17: #{descriminator_loss.1} parent=0 // pred_fallthru
    _

</llo_original>
